<compile_context>
chip_gen: v5e
topology: v5e:2x2
jax: 0.10.0
libtpu: 0.0.40
codegen_flags: <defaults>
</compile_context>

<pallas_src>
import math
import functools

import jax
import jax.numpy as jnp
from jax.experimental import pallas as pl
from jax.experimental.pallas import tpu as pltpu


# --------------------------------------------------------------------------
# Helpers
# --------------------------------------------------------------------------

def _cdiv(a, b):
    return -(-a // b)


def _round_up(x, m):
    return _cdiv(x, m) * m


def _tpu_vmem_capacity_bytes():
    try:
        return int(pltpu.get_tpu_info().vmem_capacity_bytes)
    except Exception:
        return 64 * 1024 * 1024  # conservative (v7x-sized) fallback


def _vmem_limit_bytes():
    cap = _tpu_vmem_capacity_bytes()
    # v7x (64 MiB) -> ~48 MiB scoped; v5e/v6e (128 MiB) -> 96 MiB.
    return min(96 * 1024 * 1024, int(cap * 3 // 4))


def _choose_nk_tiles(out_features, in_features):
    cap = _tpu_vmem_capacity_bytes()
    tk_cap = 2048 if cap >= 100 * 1024 * 1024 else 1024   # v7x keeps tk<=1024
    tn_cap = 512
    np128 = _round_up(out_features, 128)
    kp128 = _round_up(in_features, 128)
    # Guarantee >=2 N tiles whenever possible so the v7x 2-TC megacore has
    # something to shard along a "parallel" axis even for (1,1,K) shapes.
    min_n_tiles = 2 if np128 >= 256 else 1
    grid_n = max(min_n_tiles, _cdiv(np128, tn_cap))
    tn = _round_up(_cdiv(np128, grid_n), 128)
    tk = min(tk_cap, kp128)
    return tn, tk


# --------------------------------------------------------------------------
# Kernel: out = x @ w + b   (w already transposed to (K, N) in HBM)
# --------------------------------------------------------------------------

def _linear_bias_kernel(x_ref, w_ref, b_ref, o_ref, acc_ref):
    """Tiles: x (tm,tk) f32, w (tk,tn) f32/bf16, b (1,tn) f32, out (tm,tn)."""
    k = pl.program_id(2)

    @pl.when(k == 0)
    def _():
        acc_ref[...] = jnp.zeros_like(acc_ref)

    w = w_ref[...]
    x = x_ref[...].astype(w.dtype)            # no-op for f32 weights
    acc_ref[...] += jnp.dot(x, w, preferred_element_type=jnp.float32)

    @pl.when(k == pl.num_programs(2) - 1)
    def _():
        o_ref[...] = (acc_ref[...] + b_ref[...]).astype(o_ref.dtype)


# --------------------------------------------------------------------------
# Prepare (call once per reset_noise / mode switch) + forward
# --------------------------------------------------------------------------

def prepare_noisy_linear(params, *, training=True, weight_dtype=jnp.float32):
    """Combine, transpose and pad the parameters once.

    Returns a dict holding the padded (Kp, Np) effective weight (already
    transposed so the kernel contracts K-major with no in-kernel relayout),
    the padded (1, Np) effective bias, and the tile sizes used for padding.
    """
    if training:
        w = params["weight_mu"] + params["weight_sigma"] * params["weight_epsilon"]
        b = params["bias_mu"] + params["bias_sigma"] * params["bias_epsilon"]
    else:
        w = params["weight_mu"]
        b = params["bias_mu"]

    out_f, in_f = w.shape
    tn, tk = _choose_nk_tiles(out_f, in_f)
    Np = _round_up(out_f, tn)
    Kp = _round_up(in_f, tk)

    w_t = jnp.pad(w.T.astype(weight_dtype), ((0, Kp - in_f), (0, Np - out_f)))
    b_p = jnp.pad(b.astype(jnp.float32), (0, Np - out_f)).reshape(1, Np)

    return dict(w_t=w_t, b=b_p, out_features=out_f, in_features=in_f,
                tn=tn, tk=tk)


def noisy_linear_forward(x, prepared):
    """Forward with prepared (pre-combined / pre-padded) parameters."""
    B, in_f = x.shape
    assert in_f == prepared["in_features"], "in_features mismatch"
    out_f = prepared["out_features"]
    w_t, b = prepared["w_t"], prepared["b"]
    Kp, Np = w_t.shape
    tn, tk = prepared["tn"], prepared["tk"]

    # M tiling: minimize edge padding, tm <= 256, sublane-aligned (mult of 8).
    B8 = _round_up(B, 8)
    grid_m = _cdiv(B8, 256)
    tm = _round_up(_cdiv(B8, grid_m), 8)
    Bp = tm * grid_m

    x_p = jnp.pad(x, ((0, Bp - B), (0, Kp - in_f)))

    grid_n = Np // tn
    grid_k = Kp // tk
    grid = (grid_m, grid_n, grid_k)

    x_spec = pl.BlockSpec((tm, tk), lambda i, j, k: (i, k))
    w_spec = pl.BlockSpec((tk, tn), lambda i, j, k: (k, j))
    b_spec = pl.BlockSpec((1, tn), lambda i, j, k: (0, j))
    o_spec = pl.BlockSpec((tm, tn), lambda i, j, k: (i, j))

    w_itemsize = jnp.dtype(w_t.dtype).itemsize
    out_itemsize = jnp.dtype(x.dtype).itemsize
    cost = pl.CostEstimate(
        flops=2 * Bp * Np * Kp,
        transcendentals=0,
        bytes_accessed=(grid_n * Bp * Kp * 4           # x re-streamed per N tile
                        + grid_m * Kp * Np * w_itemsize  # w re-streamed per M tile
                        + grid_m * Np * 4                # bias per M tile
                        + Bp * Np * out_itemsize))       # output written once

    out = pl.pallas_call(
        _linear_bias_kernel,
        out_shape=jax.ShapeDtypeStruct((Bp, Np), x.dtype),
        grid=grid,
        in_specs=[x_spec, w_spec, b_spec],
        out_specs=o_spec,
        scratch_shapes=[pltpu.VMEM((tm, tn), jnp.float32)],
        compiler_params=pltpu.CompilerParams(
            dimension_semantics=("parallel", "parallel", "arbitrary"),
            vmem_limit_bytes=_vmem_limit_bytes()),
        cost_estimate=cost,
    )(x_p, w_t, b)

    return out[:B, :out_f]


def noisy_linear_forward_from_params(x, params, *, training=True,
                                     weight_dtype=jnp.float32):
    """Convenience one-shot path (prepare + forward).

    Prefer calling prepare_noisy_linear() once per reset_noise() and reusing
    the prepared dict across forwards: the mu + sigma*eps combine, transpose
    and padding are then fully amortized out of the per-forward HBM traffic.
    """
    prepared = prepare_noisy_linear(params, training=training,
                                    weight_dtype=weight_dtype)
    return noisy_linear_forward(x, prepared)


# --------------------------------------------------------------------------
# Parameter init (matches reset_parameters() + reset_noise() semantics)
# --------------------------------------------------------------------------

def _scale_noise(key, size):
    # x.sign() * sqrt(|x|), x ~ N(0, 1)
    x = jax.random.normal(key, (size,), dtype=jnp.float32)
    return jnp.sign(x) * jnp.sqrt(jnp.abs(x))


def init_noisy_linear(key, in_features, out_features, std_init=0.4):
    k_wmu, k_bmu, k_ein, k_eout = jax.random.split(key, 4)
    mu_range = 1.0 / math.sqrt(in_features)

    weight_mu = jax.random.uniform(
        k_wmu, (out_features, in_features), dtype=jnp.float32,
        minval=-mu_range, maxval=mu_range)
    weight_sigma = jnp.full((out_features, in_features),
                            std_init / math.sqrt(in_features), jnp.float32)
    bias_mu = jax.random.uniform(
        k_bmu, (out_features,), dtype=jnp.float32,
        minval=-mu_range, maxval=mu_range)
    bias_sigma = jnp.full((out_features,),
                          std_init / math.sqrt(out_features), jnp.float32)

    eps_in = _scale_noise(k_ein, in_features)
    eps_out = _scale_noise(k_eout, out_features)
    weight_epsilon = jnp.outer(eps_out, eps_in)   # epsilon_out.ger(epsilon_in)
    bias_epsilon = eps_out

    return dict(weight_mu=weight_mu, weight_sigma=weight_sigma,
                weight_epsilon=weight_epsilon, bias_mu=bias_mu,
                bias_sigma=bias_sigma, bias_epsilon=bias_epsilon)


def _reference_forward(x, p, training=True):
    if training:
        w = p["weight_mu"] + p["weight_sigma"] * p["weight_epsilon"]
        b = p["bias_mu"] + p["bias_sigma"] * p["bias_epsilon"]
    else:
        w, b = p["weight_mu"], p["bias_mu"]
    return x @ w.T + b


# --------------------------------------------------------------------------
# Demo / correctness check
# --------------------------------------------------------------------------

if __name__ == "__main__":
    key = jax.random.PRNGKey(0)

    # Case 1: small shapes straight from the module (exercises padding:
    # out 64 -> 128 lanes, in 32 -> 128, batch 8 rows).
    k_param, k_x, key = jax.random.split(key, 3)
    batch, in_features, out_features = 8, 32, 64
    params = init_noisy_linear(k_param, in_features, out_features, 0.4)
    x = jax.random.normal(k_x, (batch, in_features), dtype=jnp.float32)

    # Training mode: prepare once (as at reset_noise()), forward many times.
    prep_train = prepare_noisy_linear(params, training=True)
    y_train = jax.block_until_ready(noisy_linear_forward(x, prep_train))
    assert y_train.shape == (batch, out_features)
    assert jnp.allclose(y_train, _reference_forward(x, params, True),
                        atol=1e-4, rtol=1e-4)

    # Eval mode.
    prep_eval = prepare_noisy_linear(params, training=False)
    y_eval = jax.block_until_ready(noisy_linear_forward(x, prep_eval))
    assert jnp.allclose(y_eval, _reference_forward(x, params, False),
                        atol=1e-4, rtol=1e-4)

    # Convenience one-shot path (same semantics).
    y_once = jax.block_until_ready(
        noisy_linear_forward_from_params(x, params, training=True))
    assert jnp.allclose(y_once, _reference_forward(x, params, True),
                        atol=1e-4, rtol=1e-4)

    # bf16 HBM weight storage (halved weight bandwidth, f32 accumulation).
    # Looser tolerance: low-order noise bits of (mu + sigma*eps) are lost.
    prep_bf16 = prepare_noisy_linear(params, training=True,
                                     weight_dtype=jnp.bfloat16)
    y_bf16 = jax.block_until_ready(noisy_linear_forward(x, prep_bf16))
    assert y_bf16.shape == (batch, out_features)
    assert bool(jnp.all(jnp.isfinite(y_bf16)))
    assert jnp.allclose(y_bf16, _reference_forward(x, params, True),
                        atol=1e-1, rtol=1e-1)

    # Case 2: exercises multi-tile N (>=2 tiles for the v7x megacore) and
    # a non-trivial batch that lands on the padding-minimizing M tiling.
    k_param2, k_x2 = jax.random.split(key)
    batch2, in_f2, out_f2 = 20, 640, 384
    params2 = init_noisy_linear(k_param2, in_f2, out_f2, 0.4)
    x2 = jax.random.normal(k_x2, (batch2, in_f2), dtype=jnp.float32)

    prep2 = prepare_noisy_linear(params2, training=True)
    y2 = jax.block_until_ready(noisy_linear_forward(x2, prep2))
    assert y2.shape == (batch2, out_f2)
    assert jnp.allclose(y2, _reference_forward(x2, params2, True),
                        atol=1e-4, rtol=1e-4)

    print("KERNEL_OK")
</pallas_src>

<mosaic_0001>
module attributes {stable_mosaic.version = 11 : i64} {
  func.func @_linear_bias_kernel(%arg0: i32, %arg1: i32, %arg2: i32, %arg3: memref<8x128xf32, #tpu.memory_space<vmem>>, %arg4: memref<128x128xf32, #tpu.memory_space<vmem>>, %arg5: memref<1x128xf32, #tpu.memory_space<vmem>>, %arg6: memref<8x128xf32, #tpu.memory_space<vmem>>, %arg7: memref<8x128xf32, #tpu.memory_space<vmem>>) attributes {dimension_semantics = [#tpu.dimension_semantics<parallel>, #tpu.dimension_semantics<parallel>, #tpu.dimension_semantics<arbitrary>], iteration_bounds = array<i64: 1, 1, 1>, scalar_prefetch = 0 : i64, scratch_operands = 1 : i64, tpu.core_type = #tpu.core_type<tc>, window_params = [{transform_indices = @transform_0, window_bounds = array<i64: 8, 128>}, {transform_indices = @transform_1, window_bounds = array<i64: 128, 128>}, {transform_indices = @transform_2, window_bounds = array<i64: 1, 128>}, {transform_indices = @transform_3, window_bounds = array<i64: 8, 128>}]} {
    %c0_i32 = arith.constant 0 : i32
    %0 = arith.cmpi eq, %arg2, %c0_i32 : i32
    %1 = arith.extui %0 : i1 to i32
    %c0_i32_0 = arith.constant 0 : i32
    %2 = arith.cmpi ne, %1, %c0_i32_0 : i32
    scf.if %2 {
      %cst_10 = arith.constant 0.000000e+00 : f32
      %12 = vector.broadcast %cst_10 : f32 to vector<8x128xf32>
      %c0_11 = arith.constant 0 : index
      %c0_12 = arith.constant 0 : index
      %13 = vector.load %arg7[%c0_11, %c0_12] : memref<8x128xf32, #tpu.memory_space<vmem>>, vector<8x128xf32>
      tpu.vector_store %arg7[%c0_11, %c0_12], %12 {strides = array<i32>} : memref<8x128xf32, #tpu.memory_space<vmem>>, vector<8x128xf32>,
    } else {
    }
    %c0 = arith.constant 0 : index
    %c0_1 = arith.constant 0 : index
    %3 = vector.load %arg4[%c0, %c0_1] : memref<128x128xf32, #tpu.memory_space<vmem>>, vector<128x128xf32>
    %c0_2 = arith.constant 0 : index
    %c0_3 = arith.constant 0 : index
    %4 = vector.load %arg3[%c0_2, %c0_3] : memref<8x128xf32, #tpu.memory_space<vmem>>, vector<8x128xf32>
    %c0_4 = arith.constant 0 : index
    %c0_5 = arith.constant 0 : index
    %5 = vector.load %arg7[%c0_4, %c0_5] : memref<8x128xf32, #tpu.memory_space<vmem>>, vector<8x128xf32>
    %cst = arith.constant dense<0.000000e+00> : vector<8x128xf32>
    %6 = tpu.matmul %4, %3, %cst {dimension_numbers = #tpu.dot_dimension_numbers<[1], [0], [0], [1], [0, 0, 1, 1], [], []>} : vector<8x128xf32>, vector<128x128xf32>, vector<8x128xf32> -> vector<8x128xf32>
    %7 = arith.addf %5, %6 : vector<8x128xf32>
    %c0_6 = arith.constant 0 : index
    %c0_7 = arith.constant 0 : index
    %8 = vector.load %arg7[%c0_6, %c0_7] : memref<8x128xf32, #tpu.memory_space<vmem>>, vector<8x128xf32>
    tpu.vector_store %arg7[%c0_6, %c0_7], %7 {strides = array<i32>} : memref<8x128xf32, #tpu.memory_space<vmem>>, vector<8x128xf32>,
    %c0_i32_8 = arith.constant 0 : i32
    %9 = arith.cmpi eq, %arg2, %c0_i32_8 : i32
    %10 = arith.extui %9 : i1 to i32
    %c0_i32_9 = arith.constant 0 : i32
    %11 = arith.cmpi ne, %10, %c0_i32_9 : i32
    scf.if %11 {
      %c0_10 = arith.constant 0 : index
      %c0_11 = arith.constant 0 : index
      %12 = vector.load %arg7[%c0_10, %c0_11] : memref<8x128xf32, #tpu.memory_space<vmem>>, vector<8x128xf32>
      %c0_12 = arith.constant 0 : index
      %c0_13 = arith.constant 0 : index
      %13 = vector.load %arg5[%c0_12, %c0_13] : memref<1x128xf32, #tpu.memory_space<vmem>>, vector<1x128xf32>
      %14 = vector.broadcast %13 : vector<1x128xf32> to vector<8x128xf32>
      %15 = arith.addf %12, %14 : vector<8x128xf32>
      %c0_14 = arith.constant 0 : index
      %c0_15 = arith.constant 0 : index
      %16 = vector.load %arg6[%c0_14, %c0_15] : memref<8x128xf32, #tpu.memory_space<vmem>>, vector<8x128xf32>
      tpu.vector_store %arg6[%c0_14, %c0_15], %15 {strides = array<i32>} : memref<8x128xf32, #tpu.memory_space<vmem>>, vector<8x128xf32>,
    } else {
    }
    return
  }
  func.func @transform_0(%arg0: i32, %arg1: i32, %arg2: i32) -> (i32, i32) {
    %c0_i32 = arith.constant 0 : i32
    return %arg0, %arg2 : i32, i32
  }
  func.func @transform_1(%arg0: i32, %arg1: i32, %arg2: i32) -> (i32, i32) {
    %c0_i32 = arith.constant 0 : i32
    return %arg2, %arg1 : i32, i32
  }
  func.func @transform_2(%arg0: i32, %arg1: i32, %arg2: i32) -> (i32, i32) {
    %c0_i32 = arith.constant 0 : i32
    %c0_i32_0 = arith.constant 0 : i32
    return %c0_i32, %arg1 : i32, i32
  }
  func.func @transform_3(%arg0: i32, %arg1: i32, %arg2: i32) -> (i32, i32) {
    %c0_i32 = arith.constant 0 : i32
    return %arg0, %arg1 : i32, i32
  }
}

</mosaic_0001>

<llo_original>
// kernel: tpu_custom_call.1
$region0: #{tpu_custom_call.1}
  #allocation0 [shape = 'u32[]', space=smem, size = 0x4, offset = 0x4, fixed_abs, tag = 'smem constant byte address 0x4 - core index']
  #allocation1 [shape = 'u32[72,128]{1,0:T(1,128)}', space=vmem, size = 0x9000, scoped, tag = 'internal scratch']
  #allocation2 [shape = 'f32[8,128]{1,0:T(8,128)}', space=vmem, size = 0x1000, scoped, tag = 'scratch operand']
  %s0 = inlined_call_operand.hbm [shape: f32[8,128], index: 0, kind: input, shape index: {}]
  %s1 = inlined_call_operand.hbm [shape: f32[128,128], index: 1, kind: input, shape index: {}]
  %s2 = inlined_call_operand.vmem [shape: f32[1,128], index: 2, kind: input, shape index: {}]
  %s3 = inlined_call_operand.hbm [shape: f32[8,128], index: 3, kind: output, shape index: {}]
  %s4 = sld [smem:[#allocation0]]
  $region38: #{tpu_custom_call.1} parent=0
    _
  %s6 = ssub.s32 1, %s4
  %s7 = scalar_select 0, %s6, %s4
  $region1: #{tpu_custom_call.1} parent=0
    #allocation3 [shape = 'u8[4096]{0}', space=vmem, size = 0x1000, scoped, tag = 'input window, operand 0, single buffered']
    #allocation4 [shape = 's32[1]{0}', space=sflag, size = 0x4, scoped, tag = 'scoped memory for tpu_custom_call.1']
    #allocation5 [shape = 's32[1]{0}', space=sflag, size = 0x4, scoped, tag = 'scoped memory for tpu_custom_call.1']
    #allocation6 [shape = 'u8[65536]{0}', space=vmem, size = 0x10000, scoped, tag = 'input window, operand 1, single buffered']
    #allocation7 [shape = 's32[1]{0}', space=sflag, size = 0x4, scoped, tag = 'scoped memory for tpu_custom_call.1']
    #allocation8 [shape = 'u8[4096]{0}', space=vmem, size = 0x1000, scoped, tag = 'output window, operand 0, single buffered']
    %8 = vsyncpa [#allocation4], 0
    %9 = vsyncpa [#allocation7], 0
    %10 = vsyncpa [#allocation5], 0
    // Predicated region
    $region2: #{tpu_custom_call.1} parent=1 // pred_check
      _
    $region3: #{tpu_custom_call.1} parent=1 // pred_check_branch
      %12 = sbr.rel (0) target = $region5
    $region4: #{tpu_custom_call.1} parent=1 // pred_region
      %14 = vsyncadd [#allocation4], 0
      %s16 = sshll.u32 %s0, 4
      %s17 = int_to_ptr.hbm [resolvable:$true] %s16
      %s18 = sshll.u32 [#allocation3], 4
      %s19 = int_to_ptr.vmem [resolvable:$true] %s18
      %21 = dma.hbm_to_vmem [thread:$0]  %s17, 128, %s19, [#allocation4]
    $region5: #{tpu_custom_call.1} parent=1 // pred_fallthru
      _
    // Predicated region
    $region6: #{tpu_custom_call.1} parent=1 // pred_check
      _
    $region7: #{tpu_custom_call.1} parent=1 // pred_check_branch
      %23 = sbr.rel (0) target = $region9
    $region8: #{tpu_custom_call.1} parent=1 // pred_region
      %25 = vsyncadd [#allocation7], 0
      %s26 = sshll.u32 %s1, 4
      %s27 = int_to_ptr.hbm [resolvable:$true] %s26
      %s28 = sshll.u32 [#allocation6], 4
      %s29 = int_to_ptr.vmem [resolvable:$true] %s28
      %34 = dma.hbm_to_vmem [thread:$0]  %s27, 2048, %s29, [#allocation7], 128, 128, 8
    $region9: #{tpu_custom_call.1} parent=1 // pred_fallthru
      _
    // Predicated region
    $region10: #{tpu_custom_call.1} parent=1 // pred_check
      _
    $region11: #{tpu_custom_call.1} parent=1 // pred_check_branch
      %36 = sbr.rel (0) target = $region13
    $region12: #{tpu_custom_call.1} parent=1 // pred_region
      _
    $region13: #{tpu_custom_call.1} parent=1 // pred_fallthru
      _
    // Predicated region
    $region14: #{tpu_custom_call.1} parent=1 // pred_check
      _
    $region15: #{tpu_custom_call.1} parent=1 // pred_check_branch
      %38 = sbr.rel (0) target = $region17
    $region16: #{tpu_custom_call.1} parent=1 // pred_region
      %40 = dma.done [#allocation4], 128
    $region17: #{tpu_custom_call.1} parent=1 // pred_fallthru
      _
    // Predicated region
    $region18: #{tpu_custom_call.1} parent=1 // pred_check
      _
    $region19: #{tpu_custom_call.1} parent=1 // pred_check_branch
      %42 = sbr.rel (0) target = $region21
    $region20: #{tpu_custom_call.1} parent=1 // pred_region
      %44 = dma.done [#allocation7], 2048
    $region21: #{tpu_custom_call.1} parent=1 // pred_fallthru
      _
    %p45 = scmp.eq.s32.totalorder 0, 0
    // Predicated region
    $region22: #{tpu_custom_call.1} parent=1 // pred_check
      %p46 = pneg %p45
    $region23: #{tpu_custom_call.1} parent=1 // pred_check_branch
      %48 = sbr.rel (%p46) target = $region25
    $region24: #{tpu_custom_call.1} parent=1 // pred_region
      %49 = vst [vmem:[#allocation2] sm:$0xff] 0.0
    $region25: #{tpu_custom_call.1} parent=1 // pred_fallthru
      _
    %v50 = vld [vmem:[#allocation6] sm:$0xff]
    %v51 = vld [vmem:[#allocation6 + $0x8] sm:$0xff]
    %v52 = vld [vmem:[#allocation6 + $0x10] sm:$0xff]
    %v53 = vld [vmem:[#allocation6 + $0x18] sm:$0xff]
    %v54 = vld [vmem:[#allocation6 + $0x20] sm:$0xff]
    %v55 = vld [vmem:[#allocation6 + $0x28] sm:$0xff]
    %v56 = vld [vmem:[#allocation6 + $0x30] sm:$0xff]
    %v57 = vld [vmem:[#allocation6 + $0x38] sm:$0xff]
    %v58 = vld [vmem:[#allocation6 + $0x40] sm:$0xff]
    %v59 = vld [vmem:[#allocation6 + $0x48] sm:$0xff]
    %v60 = vld [vmem:[#allocation6 + $0x50] sm:$0xff]
    %v61 = vld [vmem:[#allocation6 + $0x58] sm:$0xff]
    %v62 = vld [vmem:[#allocation6 + $0x60] sm:$0xff]
    %v63 = vld [vmem:[#allocation6 + $0x68] sm:$0xff]
    %v64 = vld [vmem:[#allocation6 + $0x70] sm:$0xff]
    %v65 = vld [vmem:[#allocation6 + $0x78] sm:$0xff]
    %v66 = vld [vmem:[#allocation3] sm:$0xff]
    %v67 = vld [vmem:[#allocation2] sm:$0xff]
    %68 = vmatpush.msra.mxu0 %v65
    %69 = vmatpush.msra.mxu0 %v64
    %70 = vmatpush.msra.mxu0 %v63
    %71 = vmatpush.msra.mxu0 %v62
    %72 = vmatpush.msra.mxu0 %v61
    %73 = vmatpush.msra.mxu0 %v60
    %74 = vmatpush.msra.mxu0 %v59
    %75 = vmatpush.msra.mxu0 %v58
    %76 = vmatpush.msra.mxu0 %v57
    %77 = vmatpush.msra.mxu0 %v56
    %78 = vmatpush.msra.mxu0 %v55
    %79 = vmatpush.msra.mxu0 %v54
    %80 = vmatpush.msra.mxu0 %v53
    %81 = vmatpush.msra.mxu0 %v52
    %82 = vmatpush.msra.mxu0 %v51
    %83 = vmatpush.msra.mxu0 %v50
    %84 = vmatmul.f32.gmra.mxu0 %v66
    %v85 = vpop.f32.mrf.mxu0
    %v86 = vadd.f32 0.0, %v85
    %87 = vdwg.mxu0
    %v88 = vadd.f32 %v67, %v86
    %89 = vst [vmem:[#allocation2] sm:$0xff] %v88
    // Predicated region
    $region26: #{tpu_custom_call.1} parent=1 // pred_check
      %p90 = pneg %p45
    $region27: #{tpu_custom_call.1} parent=1 // pred_check_branch
      %92 = sbr.rel (%p90) target = $region29
    $region28: #{tpu_custom_call.1} parent=1 // pred_region
      %v93 = vld [vmem:[#allocation2] sm:$0xff]
      %v94 = vld [vmem:[%s2] sm:$0x1]
      %v96 = vperm.slane %v94, 0
      %v98 = vadd.f32 %v93, %v96
      %99 = vst [vmem:[#allocation8] sm:$0xff] %v98
    $region29: #{tpu_custom_call.1} parent=1 // pred_fallthru
      _
    // Predicated region
    $region30: #{tpu_custom_call.1} parent=1 // pred_check
      _
    $region31: #{tpu_custom_call.1} parent=1 // pred_check_branch
      %101 = sbr.rel (0) target = $region33
    $region32: #{tpu_custom_call.1} parent=1 // pred_region
      %103 = vsyncadd [#allocation5], 0
      %s105 = sshll.u32 [#allocation8], 4
      %s106 = int_to_ptr.vmem [resolvable:$true] %s105
      %s107 = sshll.u32 %s3, 4
      %s108 = int_to_ptr.hbm [resolvable:$true] %s107
      %110 = dma.vmem_to_hbm [thread:$0]  %s106, 128, %s108, [#allocation5]
    $region33: #{tpu_custom_call.1} parent=1 // pred_fallthru
      _
    // Predicated region
    $region34: #{tpu_custom_call.1} parent=1 // pred_check
      _
    $region35: #{tpu_custom_call.1} parent=1 // pred_check_branch
      %112 = sbr.rel (0) target = $region37
    $region36: #{tpu_custom_call.1} parent=1 // pred_region
      %114 = dma.done [#allocation5], 128
    $region37: #{tpu_custom_call.1} parent=1 // pred_fallthru
      _
    %115 = vsyncpa [#allocation4], 1
    %116 = vsyncpa [#allocation7], 1
    %117 = vsyncpa [#allocation5], 1

</llo_original>
